<compile_context>
chip_gen: v6e
topology: v6e:2x2x1
jax: 0.10.0
libtpu: 0.0.40
codegen_flags: <defaults>
</compile_context>

<pallas_src>
import functools

import jax
import jax.numpy as jnp
from jax.experimental import pallas as pl
from jax.experimental.pallas import tpu as pltpu


def _round_up(x, m):
    return (x + m - 1) // m * m


def _reduce_h_fused_kernel(x_ref, o_ref, *, acc_dtype):
    # x_ref: (tbc, H, W) block covering the whole reduced axis.
    # o_ref: (tbc, W) output block.
    o_ref[...] = jnp.sum(x_ref[...], axis=1, dtype=acc_dtype).astype(o_ref.dtype)


def _reduce_h_acc_kernel(x_ref, o_ref, acc_ref, *, acc_dtype, h_total, th, mask_h):
    # x_ref:   (tbc, th, W) block of the (B*C, H, W) input.
    # o_ref:   (tbc, W) output block, resident across the H grid axis.
    # acc_ref: (tbc, W) f32/i32 accumulator scratch.
    h = pl.program_id(1)

    @pl.when(h == 0)
    def _init():
        acc_ref[...] = jnp.zeros_like(acc_ref)

    x = x_ref[...]
    if mask_h:
        # Last H tile may run past the array; zero the out-of-range rows so
        # they do not pollute the sum.
        row = jax.lax.broadcasted_iota(jnp.int32, x.shape, dimension=1)
        x = jnp.where(h * th + row < h_total, x, jnp.zeros_like(x))

    # Reduce the H (sublane) axis; accumulate in a wider dtype.
    acc_ref[...] += jnp.sum(x, axis=1, dtype=acc_dtype)

    @pl.when(h == pl.num_programs(1) - 1)
    def _finalize():
        o_ref[...] = acc_ref[...].astype(o_ref.dtype)


def reduce_sum_dim2(x, *, block_budget_bytes=8 * 1024 * 1024):
    """Pallas equivalent of torch.sum(x, dim=2) for a 4-D NCHW tensor."""
    B, C, H, W = x.shape
    BC = B * C
    x2 = x.reshape(BC, H, W)  # free row-major reshape (C, H, W contiguous)

    dtype = jnp.dtype(x.dtype)
    itemsize = dtype.itemsize
    if jnp.issubdtype(dtype, jnp.floating):
        acc_dtype = jnp.float32
    elif jnp.issubdtype(dtype, jnp.integer) or dtype == jnp.bool_:
        acc_dtype = jnp.int32
    else:
        acc_dtype = x.dtype

    # --- Tile selection using VMEM-padded sizes (lanes pad to 128, sublanes
    # to the dtype packing).  Budget is per input block; pipeline double-buffers.
    lane_w = _round_up(W, 128)
    pack = max(8, 32 // itemsize)                          # 8 f32 / 16 bf16 / 32 i8
    full_h_row = _round_up(H, pack) * lane_w * itemsize    # one (1, H, W) slab

    if BC * full_h_row <= block_budget_bytes:
        tbc, th = BC, H                                    # whole array in one block
    elif 8 * full_h_row <= block_budget_bytes:
        tbc = (block_budget_bytes // full_h_row) // 8 * 8  # multiple of 8 rows
        th = H
    else:
        # A full-H slab is too big: tile H as the last ("arbitrary") grid axis.
        tbc = BC if BC < 8 else 8
        th_rows = block_budget_bytes // (tbc * lane_w * itemsize)
        th = min(H, max(pack, th_rows // pack * pack))

    compiler_params = pltpu.CompilerParams(
        # Raise v5e's 16 MiB scoped default so the larger blocks pipeline;
        # well within v7x's 64 MiB physical VMEM.
        vmem_limit_bytes=32 * 1024 * 1024,
    )

    if th == H:
        # Fast path: whole H per block -> no scratch, no init/finalize, 1-D grid.
        out = pl.pallas_call(
            functools.partial(_reduce_h_fused_kernel, acc_dtype=acc_dtype),
            out_shape=jax.ShapeDtypeStruct((BC, W), x.dtype),
            grid=(pl.cdiv(BC, tbc),),
            in_specs=[pl.BlockSpec((tbc, H, W), lambda i: (i, 0, 0))],
            out_specs=pl.BlockSpec((tbc, W), lambda i: (i, 0)),
            compiler_params=pltpu.CompilerParams(
                dimension_semantics=("parallel",),
                vmem_limit_bytes=32 * 1024 * 1024,
            ),
        )(x2)
        return out.reshape(B, C, W)

    # Slow path: H tiled as the last ("arbitrary") axis, accumulate in scratch.
    mask_h = (th < H) and (H % th != 0)
    grid = (pl.cdiv(BC, tbc), pl.cdiv(H, th))

    kernel = functools.partial(
        _reduce_h_acc_kernel, acc_dtype=acc_dtype, h_total=H, th=th, mask_h=mask_h
    )

    out = pl.pallas_call(
        kernel,
        out_shape=jax.ShapeDtypeStruct((BC, W), x.dtype),
        grid=grid,
        in_specs=[pl.BlockSpec((tbc, th, W), lambda i, h: (i, h, 0))],
        out_specs=pl.BlockSpec((tbc, W), lambda i, h: (i, 0)),
        scratch_shapes=[pltpu.VMEM((tbc, W), acc_dtype)],
        compiler_params=pltpu.CompilerParams(
            # Fused B*C axis shards across TensorCores (v7x megacore); the H
            # reduction axis is last and sequential.
            dimension_semantics=("parallel", "arbitrary"),
            vmem_limit_bytes=32 * 1024 * 1024,
        ),
    )(x2)

    return out.reshape(B, C, W)


if __name__ == "__main__":
    key = jax.random.PRNGKey(0)
    # Shape consistent with an NCHW conv activation fed to this layer.
    x = jax.random.normal(key, (2, 4, 16, 16), dtype=jnp.float32)

    out = reduce_sum_dim2(x)
    out = jax.block_until_ready(out)

    # Correctness check against plain JAX reference (== torch.sum(x, dim=2)).
    ref = jnp.sum(x, axis=2)
    assert out.shape == ref.shape == (2, 4, 16)
    assert jnp.allclose(out, ref, atol=1e-5, rtol=1e-5)

    print("KERNEL_OK")
</pallas_src>

<mosaic_0001>
module attributes {stable_mosaic.version = 11 : i64} {
  func.func @_reduce_h_fused_kernel(%arg0: i32, %arg1: memref<8x16x16xf32, #tpu.memory_space<vmem>>, %arg2: memref<8x16xf32, #tpu.memory_space<vmem>>) attributes {dimension_semantics = [#tpu.dimension_semantics<parallel>], iteration_bounds = array<i64: 1>, scalar_prefetch = 0 : i64, scratch_operands = 0 : i64, tpu.core_type = #tpu.core_type<tc>, window_params = [{transform_indices = @transform_0, window_bounds = array<i64: 8, 16, 16>}, {transform_indices = @transform_1, window_bounds = array<i64: 8, 16>}]} {
    %c0 = arith.constant 0 : index
    %c0_0 = arith.constant 0 : index
    %c0_1 = arith.constant 0 : index
    %0 = vector.load %arg1[%c0, %c0_0, %c0_1] : memref<8x16x16xf32, #tpu.memory_space<vmem>>, vector<8x16x16xf32>
    %cst = arith.constant dense<0.000000e+00> : vector<8x16xf32>
    %1 = vector.multi_reduction <add>, %0, %cst [1] : vector<8x16x16xf32> to vector<8x16xf32>
    %c0_2 = arith.constant 0 : index
    %c0_3 = arith.constant 0 : index
    %2 = vector.load %arg2[%c0_2, %c0_3] : memref<8x16xf32, #tpu.memory_space<vmem>>, vector<8x16xf32>
    tpu.vector_store %arg2[%c0_2, %c0_3], %1 {strides = array<i32>} : memref<8x16xf32, #tpu.memory_space<vmem>>, vector<8x16xf32>,
    return
  }
  func.func @transform_0(%arg0: i32) -> (i32, i32, i32) {
    %c0_i32 = arith.constant 0 : i32
    %c0_i32_0 = arith.constant 0 : i32
    %c0_i32_1 = arith.constant 0 : i32
    return %arg0, %c0_i32, %c0_i32_0 : i32, i32, i32
  }
  func.func @transform_1(%arg0: i32) -> (i32, i32) {
    %c0_i32 = arith.constant 0 : i32
    %c0_i32_0 = arith.constant 0 : i32
    return %arg0, %c0_i32 : i32, i32
  }
}

</mosaic_0001>

<llo_original>
// kernel: tpu_custom_call.1
$region0: #{tpu_custom_call.1}
  #allocation0 [shape = 'u32[]', space=smem, size = 0x4, offset = 0x4, fixed_abs, tag = 'smem constant byte address 0x4 - core index']
  #allocation1 [shape = 'u32[144,128]{1,0:T(1,128)}', space=vmem, size = 0x12000, scoped, tag = 'internal scratch']
  %s0 = inlined_call_operand.hbm [shape: f32[8,16,16], index: 0, kind: input, shape index: {}]
  %s1 = inlined_call_operand.hbm [shape: f32[8,16], index: 1, kind: output, shape index: {}]
  %s2 = sld [smem:[#allocation0]]
  $region18: #{tpu_custom_call.1} parent=0
    _
  %s4 = ssub.s32 1, %s2
  %s5 = scalar_select 0, %s4, %s2
  $region1: #{tpu_custom_call.1} parent=0
    #allocation2 [shape = 'u8[65536]{0}', space=vmem, size = 0x10000, scoped, tag = 'input window, operand 0, single buffered']
    #allocation3 [shape = 's32[1]{0}', space=sflag, size = 0x4, scoped, tag = 'scoped memory for tpu_custom_call.1']
    #allocation4 [shape = 's32[1]{0}', space=sflag, size = 0x4, scoped, tag = 'scoped memory for tpu_custom_call.1']
    #allocation5 [shape = 'u8[4096]{0}', space=vmem, size = 0x1000, scoped, tag = 'output window, operand 0, single buffered']
    %6 = vsyncpa [#allocation3], 0
    %7 = vsyncpa [#allocation4], 0
    // Predicated region
    $region2: #{tpu_custom_call.1} parent=1 // pred_check
      _
    $region3: #{tpu_custom_call.1} parent=1 // pred_check_branch
      %9 = sbr.rel (0) target = $region5
    $region4: #{tpu_custom_call.1} parent=1 // pred_region
      %s11 = ssub.s32 2048, 2048
      %12 = vsyncadd [#allocation3], %s11
      %s13 = sshll.u32 [#allocation2], 4
      %s14 = int_to_ptr.vmem [resolvable:$true] %s13
      %19 = dma.hbm_to_vmem [thread:$0]  %s0, 2048, %s14, [#allocation3], 128, 128, 8
    $region5: #{tpu_custom_call.1} parent=1 // pred_fallthru
      _
    // Predicated region
    $region6: #{tpu_custom_call.1} parent=1 // pred_check
      _
    $region7: #{tpu_custom_call.1} parent=1 // pred_check_branch
      %21 = sbr.rel (0) target = $region9
    $region8: #{tpu_custom_call.1} parent=1 // pred_region
      %22 = dma.done [#allocation3], 2048
    $region9: #{tpu_custom_call.1} parent=1 // pred_fallthru
      _
    %v23 = vld [vmem:[#allocation2] sm:$0xff]
    %v24 = vld [vmem:[#allocation2 + $0x8] sm:$0xff]
    %v25 = vld [vmem:[#allocation2 + $0x10] sm:$0xff]
    %v26 = vld [vmem:[#allocation2 + $0x18] sm:$0xff]
    %v27 = vld [vmem:[#allocation2 + $0x20] sm:$0xff]
    %v28 = vld [vmem:[#allocation2 + $0x28] sm:$0xff]
    %v29 = vld [vmem:[#allocation2 + $0x30] sm:$0xff]
    %v30 = vld [vmem:[#allocation2 + $0x38] sm:$0xff]
    %v31 = vld [vmem:[#allocation2 + $0x40] sm:$0xff]
    %v32 = vld [vmem:[#allocation2 + $0x48] sm:$0xff]
    %v33 = vld [vmem:[#allocation2 + $0x50] sm:$0xff]
    %v34 = vld [vmem:[#allocation2 + $0x58] sm:$0xff]
    %v35 = vld [vmem:[#allocation2 + $0x60] sm:$0xff]
    %v36 = vld [vmem:[#allocation2 + $0x68] sm:$0xff]
    %v37 = vld [vmem:[#allocation2 + $0x70] sm:$0xff]
    %v38 = vld [vmem:[#allocation2 + $0x78] sm:$0xff]
    %vm39 = vcmask 130048
    %v40 = vsel %vm39, %v23, 0.0
    %v41 = vsel %vm39, %v24, 0.0
    %v42 = vadd.f32 %v40, %v41
    %v43 = vrot.slane %v42, 4
    %v44 = vadd.f32 %v42, %v43
    %v45 = vrot.slane %v44, 2
    %v46 = vadd.f32 %v44, %v45
    %v47 = vrot.slane %v46, 1
    %v48 = vadd.f32 %v46, %v47
    %v49 = vsel %vm39, %v25, 0.0
    %v50 = vsel %vm39, %v26, 0.0
    %v51 = vadd.f32 %v49, %v50
    %v52 = vrot.slane %v51, 4
    %v53 = vadd.f32 %v51, %v52
    %v54 = vrot.slane %v53, 2
    %v55 = vadd.f32 %v53, %v54
    %v56 = vrot.slane %v55, 1
    %v57 = vadd.f32 %v55, %v56
    %v58 = vsel %vm39, %v27, 0.0
    %v59 = vsel %vm39, %v28, 0.0
    %v60 = vadd.f32 %v58, %v59
    %v61 = vrot.slane %v60, 4
    %v62 = vadd.f32 %v60, %v61
    %v63 = vrot.slane %v62, 2
    %v64 = vadd.f32 %v62, %v63
    %v65 = vrot.slane %v64, 1
    %v66 = vadd.f32 %v64, %v65
    %v67 = vsel %vm39, %v29, 0.0
    %v68 = vsel %vm39, %v30, 0.0
    %v69 = vadd.f32 %v67, %v68
    %v70 = vrot.slane %v69, 4
    %v71 = vadd.f32 %v69, %v70
    %v72 = vrot.slane %v71, 2
    %v73 = vadd.f32 %v71, %v72
    %v74 = vrot.slane %v73, 1
    %v75 = vadd.f32 %v73, %v74
    %v76 = vsel %vm39, %v31, 0.0
    %v77 = vsel %vm39, %v32, 0.0
    %v78 = vadd.f32 %v76, %v77
    %v79 = vrot.slane %v78, 4
    %v80 = vadd.f32 %v78, %v79
    %v81 = vrot.slane %v80, 2
    %v82 = vadd.f32 %v80, %v81
    %v83 = vrot.slane %v82, 1
    %v84 = vadd.f32 %v82, %v83
    %v85 = vsel %vm39, %v33, 0.0
    %v86 = vsel %vm39, %v34, 0.0
    %v87 = vadd.f32 %v85, %v86
    %v88 = vrot.slane %v87, 4
    %v89 = vadd.f32 %v87, %v88
    %v90 = vrot.slane %v89, 2
    %v91 = vadd.f32 %v89, %v90
    %v92 = vrot.slane %v91, 1
    %v93 = vadd.f32 %v91, %v92
    %v94 = vsel %vm39, %v35, 0.0
    %v95 = vsel %vm39, %v36, 0.0
    %v96 = vadd.f32 %v94, %v95
    %v97 = vrot.slane %v96, 4
    %v98 = vadd.f32 %v96, %v97
    %v99 = vrot.slane %v98, 2
    %v100 = vadd.f32 %v98, %v99
    %v101 = vrot.slane %v100, 1
    %v102 = vadd.f32 %v100, %v101
    %v103 = vsel %vm39, %v37, 0.0
    %v104 = vsel %vm39, %v38, 0.0
    %v105 = vadd.f32 %v103, %v104
    %v106 = vrot.slane %v105, 4
    %v107 = vadd.f32 %v105, %v106
    %v108 = vrot.slane %v107, 2
    %v109 = vadd.f32 %v107, %v108
    %v110 = vrot.slane %v109, 1
    %v111 = vadd.f32 %v109, %v110
    %vm120 = vcmask 1041409
    %v121 = vsel %vm120, %v57, %v48
    %vm122 = vcmask 1042434
    %v123 = vsel %vm122, %v66, %v121
    %vm124 = vcmask 1043459
    %v125 = vsel %vm124, %v75, %v123
    %vm126 = vcmask 1044484
    %v127 = vsel %vm126, %v84, %v125
    %vm128 = vcmask 1045509
    %v129 = vsel %vm128, %v93, %v127
    %vm130 = vcmask 1046534
    %v131 = vsel %vm130, %v102, %v129
    %vm132 = vcmask 1047559
    %v133 = vsel %vm132, %v111, %v131
    %135 = vst.msk [vmem:[#allocation5] sm:$0xff] %vm39, %v133
    // Predicated region
    $region10: #{tpu_custom_call.1} parent=1 // pred_check
      _
    $region11: #{tpu_custom_call.1} parent=1 // pred_check_branch
      %137 = sbr.rel (0) target = $region13
    $region12: #{tpu_custom_call.1} parent=1 // pred_region
      %s139 = ssub.s32 128, 128
      %140 = vsyncadd [#allocation4], %s139
      %s142 = sshll.u32 [#allocation5], 4
      %s143 = int_to_ptr.vmem [resolvable:$true] %s142
      %145 = dma.vmem_to_hbm [thread:$0]  %s143, 128, %s1, [#allocation4]
    $region13: #{tpu_custom_call.1} parent=1 // pred_fallthru
      _
    // Predicated region
    $region14: #{tpu_custom_call.1} parent=1 // pred_check
      _
    $region15: #{tpu_custom_call.1} parent=1 // pred_check_branch
      %147 = sbr.rel (0) target = $region17
    $region16: #{tpu_custom_call.1} parent=1 // pred_region
      %148 = dma.done [#allocation4], 128
    $region17: #{tpu_custom_call.1} parent=1 // pred_fallthru
      _
    %149 = vsyncpa [#allocation3], 1
    %150 = vsyncpa [#allocation4], 1

</llo_original>
